<compile_context>
chip_gen: v5e
topology: v5e:2x2
jax: 0.10.0
libtpu: 0.0.40
codegen_flags: <defaults>
</compile_context>

<pallas_src>
import jax
import jax.numpy as jnp
from jax import lax
from jax.experimental import pallas as pl
from jax.experimental.pallas import tpu as pltpu


def _mc_linear_kernel(x_ref, w_ref, b_ref, o_ref):
    # x_ref: (B, D_in), w_ref: (D_in, D_out), b_ref: (1, D_out)
    # o_ref: (s_tile, B, D_out) -- one tile of MC samples (stacked dim=0).
    s_tile = o_ref.shape[0]

    y = jnp.dot(x_ref[...], w_ref[...], preferred_element_type=jnp.float32)
    y = (y + b_ref[...]).astype(o_ref.dtype)                  # (B, D_out)

    # Stream identical copies of y into the output block in small slabs so the
    # store loop keeps only a few vregs live instead of materializing the full
    # (s_tile, B, D_out) broadcast before a single giant store.
    rep = min(8, s_tile)
    slab = jnp.broadcast_to(y[None, :, :], (rep,) + y.shape)  # <= 8 samples
    n_full = s_tile // rep
    rem = s_tile - n_full * rep

    if n_full <= 16:
        # Short, fully static store sequence (the common case at small tiles).
        for k in range(n_full):
            o_ref[pl.ds(k * rep, rep)] = slab
    else:
        def body(k, carry):
            off = pl.multiple_of(k * rep, rep)
            o_ref[pl.ds(off, rep)] = slab
            return carry

        lax.fori_loop(0, n_full, body, 0, unroll=8)

    if rem:
        o_ref[pl.ds(n_full * rep, rem)] = slab[:rem]


def _vmem_capacity_bytes():
    # Generation-aware VMEM capacity (128 MiB v5e/v6e, 64 MiB per-TC on v7x);
    # fall back to the smallest (v7x) figure so the tiling is safe everywhere.
    try:
        cap = getattr(pltpu.get_tpu_info(), "vmem_capacity_bytes", None)
        if cap:
            return int(cap)
    except Exception:
        pass
    return 64 * 1024 * 1024


def mc_sampler_forward(x, w, b, mc_samples=None):
    """Pallas equivalent of MCSampler(model=Linear(W, b), stack_result=True)(x, S).

    x: (B, D_in) f32, w: (D_in, D_out) f32, b: (D_out,) f32
    returns: (mc_samples, B, D_out) f32  (== torch.stack([x@W+b]*mc_samples, 0))
    """
    if mc_samples is None:
        raise ValueError("mc_samples was not given in init or forward!")
    mc_samples = int(mc_samples)

    B, D_in = x.shape
    D_out = w.shape[1]
    b2 = b.reshape(1, D_out)
    itemsize = jnp.dtype(x.dtype).itemsize

    # ---- Generation-aware tiling of the MC-sample axis ---------------------
    vmem_cap = _vmem_capacity_bytes()
    vmem_limit = (vmem_cap * 3) // 4          # ~96 MiB v5e/v6e, ~48 MiB v7x
    block_budget = vmem_cap // 4              # double-buffered output block
    out_bytes_per_sample = B * D_out * itemsize
    s_tile_max = max(1, block_budget // out_bytes_per_sample)

    num_steps = -(-mc_samples // min(s_tile_max, mc_samples))   # ceil-div
    if mc_samples >= 2:
        # >= 2 near-equal steps so both v7x TensorCores drive the write-bound
        # output DMA; costs one extra ~0.35us pipeline step on 1-TC chips.
        num_steps = max(num_steps, 2)
    s_tile = -(-mc_samples // num_steps)       # rebalanced: no tiny ragged tail
    grid = (-(-mc_samples // s_tile),)

    cost = pl.CostEstimate(
        flops=2 * B * D_in * D_out * grid[0],
        transcendentals=0,
        bytes_accessed=(mc_samples * B * D_out + B * D_in + D_in * D_out + D_out)
        * itemsize,
    )

    return pl.pallas_call(
        _mc_linear_kernel,
        out_shape=jax.ShapeDtypeStruct((mc_samples, B, D_out), x.dtype),
        grid_spec=pltpu.PrefetchScalarGridSpec(
            num_scalar_prefetch=0,
            grid=grid,
            in_specs=[
                # Grid-invariant inputs (same block every step).  For a real
                # inner model with a large W, add pipeline_mode=pl.Buffered(1)
                # so the constant weight is not double-buffered in VMEM.
                pl.BlockSpec((B, D_in), lambda s: (0, 0)),
                pl.BlockSpec((D_in, D_out), lambda s: (0, 0)),
                pl.BlockSpec((1, D_out), lambda s: (0, 0)),
            ],
            out_specs=pl.BlockSpec((s_tile, B, D_out), lambda s: (s, 0, 0)),
        ),
        compiler_params=pltpu.CompilerParams(
            dimension_semantics=("parallel",),
            vmem_limit_bytes=vmem_limit,
        ),
        cost_estimate=cost,
    )(x, w, b2)


if __name__ == "__main__":
    # Small, deterministic setup.  D_out = 128 keeps output stores lane-dense.
    B, D_in, D_out = 8, 32, 128
    MC_SAMPLES = 4

    key = jax.random.PRNGKey(0)
    kx, kw, kb = jax.random.split(key, 3)
    x = jax.random.normal(kx, (B, D_in), dtype=jnp.float32)
    # Deterministic synthetic parameters for the inner model (Linear D_in->D_out).
    w = jax.random.normal(kw, (D_in, D_out), dtype=jnp.float32) * 0.1
    b = jax.random.normal(kb, (D_out,), dtype=jnp.float32) * 0.1

    y_ref = x @ w + b

    # Main check: torch.stack(model([x]*S), dim=0) with a deterministic model.
    out = jax.block_until_ready(mc_sampler_forward(x, w, b, MC_SAMPLES))
    ref = jnp.stack([y_ref] * MC_SAMPLES, axis=0)
    assert out.shape == (MC_SAMPLES, B, D_out)
    assert jnp.allclose(out, ref, atol=1e-5, rtol=1e-5)

    # Exercise the multi-step grid with a ragged (clipped) last tile:
    # 37 samples -> two balanced tiles of 19 (second clipped to 18 on writeback).
    MC2 = 37
    out2 = jax.block_until_ready(mc_sampler_forward(x, w, b, MC2))
    ref2 = jnp.stack([y_ref] * MC2, axis=0)
    assert out2.shape == (MC2, B, D_out)
    assert jnp.allclose(out2, ref2, atol=1e-5, rtol=1e-5)

    print("KERNEL_OK")
</pallas_src>

<mosaic_0001>
module attributes {stable_mosaic.version = 11 : i64} {
  func.func @_mc_linear_kernel(%arg0: i32, %arg1: memref<8x32xf32, #tpu.memory_space<vmem>>, %arg2: memref<32x128xf32, #tpu.memory_space<vmem>>, %arg3: memref<1x128xf32, #tpu.memory_space<vmem>>, %arg4: memref<2x8x128xf32, #tpu.memory_space<vmem>>) attributes {dimension_semantics = [#tpu.dimension_semantics<parallel>], iteration_bounds = array<i64: 2>, scalar_prefetch = 0 : i64, scratch_operands = 0 : i64, tpu.core_type = #tpu.core_type<tc>, window_params = [{pipeline_mode = #tpu.pipeline_mode<synchronous>, transform_indices = @transform_0, window_bounds = array<i64: 8, 32>}, {pipeline_mode = #tpu.pipeline_mode<synchronous>, transform_indices = @transform_1, window_bounds = array<i64: 32, 128>}, {pipeline_mode = #tpu.pipeline_mode<synchronous>, transform_indices = @transform_2, window_bounds = array<i64: 1, 128>}, {transform_indices = @transform_3, window_bounds = array<i64: 2, 8, 128>}]} {
    %c0 = arith.constant 0 : index
    %c0_0 = arith.constant 0 : index
    %0 = vector.load %arg1[%c0, %c0_0] : memref<8x32xf32, #tpu.memory_space<vmem>>, vector<8x32xf32>
    %c0_1 = arith.constant 0 : index
    %c0_2 = arith.constant 0 : index
    %1 = vector.load %arg2[%c0_1, %c0_2] : memref<32x128xf32, #tpu.memory_space<vmem>>, vector<32x128xf32>
    %cst = arith.constant dense<0.000000e+00> : vector<8x128xf32>
    %2 = tpu.matmul %0, %1, %cst {dimension_numbers = #tpu.dot_dimension_numbers<[1], [0], [0], [1], [0, 0, 1, 1], [], []>} : vector<8x32xf32>, vector<32x128xf32>, vector<8x128xf32> -> vector<8x128xf32>
    %c0_3 = arith.constant 0 : index
    %c0_4 = arith.constant 0 : index
    %3 = vector.load %arg3[%c0_3, %c0_4] : memref<1x128xf32, #tpu.memory_space<vmem>>, vector<1x128xf32>
    %4 = vector.broadcast %3 : vector<1x128xf32> to vector<8x128xf32>
    %5 = arith.addf %2, %4 : vector<8x128xf32>
    %6 = vector.shape_cast %5 : vector<8x128xf32> to vector<1x8x128xf32>
    %7 = vector.shape_cast %6 : vector<1x8x128xf32> to vector<1x8x128xf32>
    %8 = vector.broadcast %7 : vector<1x8x128xf32> to vector<2x8x128xf32>
    %c0_5 = arith.constant 0 : index
    %c0_6 = arith.constant 0 : index
    %c0_7 = arith.constant 0 : index
    %9 = vector.load %arg4[%c0_5, %c0_6, %c0_7] : memref<2x8x128xf32, #tpu.memory_space<vmem>>, vector<2x8x128xf32>
    tpu.vector_store %arg4[%c0_5, %c0_6, %c0_7], %8 {strides = array<i32>} : memref<2x8x128xf32, #tpu.memory_space<vmem>>, vector<2x8x128xf32>,
    return
  }
  func.func @transform_0(%arg0: i32) -> (i32, i32) {
    %c0_i32 = arith.constant 0 : i32
    %c0_i32_0 = arith.constant 0 : i32
    %c0_i32_1 = arith.constant 0 : i32
    return %c0_i32, %c0_i32_0 : i32, i32
  }
  func.func @transform_1(%arg0: i32) -> (i32, i32) {
    %c0_i32 = arith.constant 0 : i32
    %c0_i32_0 = arith.constant 0 : i32
    %c0_i32_1 = arith.constant 0 : i32
    return %c0_i32, %c0_i32_0 : i32, i32
  }
  func.func @transform_2(%arg0: i32) -> (i32, i32) {
    %c0_i32 = arith.constant 0 : i32
    %c0_i32_0 = arith.constant 0 : i32
    %c0_i32_1 = arith.constant 0 : i32
    return %c0_i32, %c0_i32_0 : i32, i32
  }
  func.func @transform_3(%arg0: i32) -> (i32, i32, i32) {
    %c0_i32 = arith.constant 0 : i32
    %c0_i32_0 = arith.constant 0 : i32
    %c0_i32_1 = arith.constant 0 : i32
    return %arg0, %c0_i32, %c0_i32_0 : i32, i32, i32
  }
}

</mosaic_0001>

<llo_original>
// kernel: tpu_custom_call.1
$region0: #{tpu_custom_call.1}
  #allocation0 [shape = 'u32[]', space=smem, size = 0x4, offset = 0x4, fixed_abs, tag = 'smem constant byte address 0x4 - core index']
  #allocation1 [shape = 'u32[72,128]{1,0:T(1,128)}', space=vmem, size = 0x9000, scoped, tag = 'internal scratch']
  %s0 = inlined_call_operand.hbm [shape: f32[8,32], index: 0, kind: input, shape index: {}]
  %s1 = inlined_call_operand.hbm [shape: f32[32,128], index: 1, kind: input, shape index: {}]
  %s2 = inlined_call_operand.vmem [shape: f32[1,128], index: 2, kind: input, shape index: {}]
  %s3 = inlined_call_operand.hbm [shape: f32[4,8,128], index: 3, kind: output, shape index: {}]
  %s4 = sld [smem:[#allocation0]]
  $region53: #{tpu_custom_call.1} parent=0
    _
  %s6 = ssub.s32 1, %s4
  %s7 = scalar_select 0, %s6, %s4
  $region1: #{tpu_custom_call.1} parent=0
    #allocation2 [shape = 'u8[4096]{0}', space=vmem, size = 0x1000, scoped, tag = 'input window, operand 0, single buffered']
    #allocation3 [shape = 's32[2]{0}', space=sflag, size = 0x8, scoped, tag = 'scoped memory for tpu_custom_call.1']
    #allocation4 [shape = 's32[2]{0}', space=sflag, size = 0x8, scoped, tag = 'scoped memory for tpu_custom_call.1']
    #allocation5 [shape = 'u8[16384]{0}', space=vmem, size = 0x4000, scoped, tag = 'input window, operand 1, single buffered']
    #allocation6 [shape = 's32[1]{0}', space=sflag, size = 0x4, scoped, tag = 'scoped memory for tpu_custom_call.1']
    #allocation7 [shape = 'u8[16384]{0}', space=vmem, size = 0x4000, scoped, tag = 'output window, operand 0']
    %8 = vsyncpa [#allocation3], 0
    %9 = vsyncpa [#allocation6], 0
    %10 = vsyncpa [#allocation4], 0
    %s11 = scalar_lea.sflag [#allocation4], 1
    %12 = vsyncpa %s11, 0
    loop: start=0, step=1, limit=4
    $region2: #{tpu_custom_call.1} parent=1 // loop_pre_header
      _
    $region3: #{tpu_custom_call.1} parent=1 // loop_header
      %s14 = sphi 0, %s18
      %p15 = scmp.ge.s32.totalorder %s14, 4
      %s22 = sphi 0, %s22
      %s24 = sphi 0, %s22
      %s25 = sphi 0, %s24
      %s39 = sphi 0, %s25
      %s43 = sphi 0, %s43
      %s45 = sphi 0, %s43
      %s46 = sphi 0, %s45
      %s60 = sphi 0, %s46
      %s64 = sphi 0, %s64
      %s66 = sphi 0, %s64
      %s67 = sphi 0, %s66
      %s81 = sphi 0, %s67
      %s87 = sphi 0, %s89
      %s90 = sphi 0, %s87
      %s91 = sphi 0, %s90
      %s107 = sphi 0, %s91
    $region4: #{tpu_custom_call.1} parent=1 // loop_header_branch
      %17 = sbr.rel (%p15) target = $region8
    $region5: #{tpu_custom_call.1} parent=1 // loop_body
      %s19 = ssub.s32 %s14, 1
      %s20 = ssub.s32 %s14, 2
      %s21 = sadd.s32 %s14, 1
      %s23 = sadd.s32 %s22, 1
      %p26 = scmp.eq.s32.totalorder %s14, 1
      %p27 = scmp.ne.s32.totalorder %s22, %s24
      %p28 = scmp.eq.s32.totalorder %s14, 0
      %p29 = por %p27, %p28
      %p30 = scmp.ne.s32.totalorder %s22, %s24
      %p31 = scmp.eq.s32.totalorder %s19, 1
      %p32 = por %p30, %p31
      %p33 = scmp.ne.s32.totalorder %s24, %s25
      %p34 = scmp.eq.s32.totalorder %s19, 0
      %p35 = por %p33, %p34
      %p36 = scmp.ne.s32.totalorder %s24, %s25
      %p37 = scmp.eq.s32.totalorder %s20, 1
      %p38 = por %p36, %p37
      %p40 = scmp.ne.s32.totalorder %s25, %s39
      %p41 = scmp.eq.s32.totalorder %s20, 0
      %p42 = por %p40, %p41
      %s44 = sadd.s32 %s43, 1
      %p47 = scmp.eq.s32.totalorder %s14, 1
      %p48 = scmp.ne.s32.totalorder %s43, %s45
      %p49 = scmp.eq.s32.totalorder %s14, 0
      %p50 = por %p48, %p49
      %p51 = scmp.ne.s32.totalorder %s43, %s45
      %p52 = scmp.eq.s32.totalorder %s19, 1
      %p53 = por %p51, %p52
      %p54 = scmp.ne.s32.totalorder %s45, %s46
      %p55 = scmp.eq.s32.totalorder %s19, 0
      %p56 = por %p54, %p55
      %p57 = scmp.ne.s32.totalorder %s45, %s46
      %p58 = scmp.eq.s32.totalorder %s20, 1
      %p59 = por %p57, %p58
      %p61 = scmp.ne.s32.totalorder %s46, %s60
      %p62 = scmp.eq.s32.totalorder %s20, 0
      %p63 = por %p61, %p62
      %s65 = sadd.s32 %s64, 1
      %p68 = scmp.eq.s32.totalorder %s14, 1
      %p69 = scmp.ne.s32.totalorder %s64, %s66
      %p70 = scmp.eq.s32.totalorder %s14, 0
      %p71 = por %p69, %p70
      %p72 = scmp.ne.s32.totalorder %s64, %s66
      %p73 = scmp.eq.s32.totalorder %s19, 1
      %p74 = por %p72, %p73
      %p75 = scmp.ne.s32.totalorder %s66, %s67
      %p76 = scmp.eq.s32.totalorder %s19, 0
      %p77 = por %p75, %p76
      %p78 = scmp.ne.s32.totalorder %s66, %s67
      %p79 = scmp.eq.s32.totalorder %s20, 1
      %p80 = por %p78, %p79
      %p82 = scmp.ne.s32.totalorder %s67, %s81
      %p83 = scmp.eq.s32.totalorder %s20, 0
      %p84 = por %p82, %p83
      %s85 = ssub.s32 %s14, %s21
      %p86 = scmp.eq.s32.totalorder %s85, 0
      %s88 = sadd.s32 %s87, 1
      %s89 = scalar_select %p86, %s87, %s88
      %p92 = pneg %p86
      %p93 = scmp.eq.s32.totalorder %s14, 1
      %p94 = por %p92, %p93
      %p95 = scmp.ne.s32.totalorder %s87, %s90
      %p96 = scmp.eq.s32.totalorder %s14, 0
      %p97 = por %p95, %p96
      %p98 = scmp.ne.s32.totalorder %s87, %s90
      %p99 = scmp.eq.s32.totalorder %s19, 1
      %p100 = por %p98, %p99
      %p101 = scmp.ne.s32.totalorder %s90, %s91
      %p102 = scmp.eq.s32.totalorder %s19, 0
      %p103 = por %p101, %p102
      %p104 = scmp.ne.s32.totalorder %s90, %s91
      %p105 = scmp.eq.s32.totalorder %s20, 1
      %p106 = por %p104, %p105
      %p108 = scmp.ne.s32.totalorder %s91, %s107
      %p109 = scmp.eq.s32.totalorder %s20, 0
      %p110 = por %p108, %p109
      %p111 = scmp.le.s32.totalorder 1, %s14
      %p112 = scmp.lt.s32.totalorder %s14, 3
      %p113 = pnand %p111, %p112
      %p114 = pneg %p113
      // Predicated region
      $region9: #{tpu_custom_call.1} parent=5 // pred_check
        _
      $region10: #{tpu_custom_call.1} parent=5 // pred_check_branch
        %116 = sbr.rel (%p113) target = $region12
      $region11: #{tpu_custom_call.1} parent=5 // pred_region
        %s117 = ssub.s32 %s14, 1
        // Predicated region
        $region13: #{tpu_custom_call.1} parent=11 // pred_check
          %p118 = pneg %p35
        $region14: #{tpu_custom_call.1} parent=11 // pred_check_branch
          %120 = sbr.rel (%p118) target = $region16
        $region15: #{tpu_custom_call.1} parent=11 // pred_region
          %122 = vsyncadd [#allocation3], 0
          %s124 = sshll.u32 %s0, 4
          %s125 = int_to_ptr.hbm [resolvable:$true] %s124
          %s126 = sshll.u32 [#allocation2], 4
          %s127 = int_to_ptr.vmem [resolvable:$true] %s126
          %129 = dma.hbm_to_vmem [thread:$0]  %s125, 128, %s127, [#allocation3]
        $region16: #{tpu_custom_call.1} parent=11 // pred_fallthru
          _
        // Predicated region
        $region17: #{tpu_custom_call.1} parent=11 // pred_check
          %p130 = pneg %p56
        $region18: #{tpu_custom_call.1} parent=11 // pred_check_branch
          %132 = sbr.rel (%p130) target = $region20
        $region19: #{tpu_custom_call.1} parent=11 // pred_region
          %134 = vsyncadd [#allocation6], 0
          %s135 = sshll.u32 %s1, 4
          %s136 = int_to_ptr.hbm [resolvable:$true] %s135
          %s137 = sshll.u32 [#allocation5], 4
          %s138 = int_to_ptr.vmem [resolvable:$true] %s137
          %143 = dma.hbm_to_vmem [thread:$0]  %s136, 512, %s138, [#allocation6], 128, 128, 8
        $region20: #{tpu_custom_call.1} parent=11 // pred_fallthru
          _
        // Predicated region
        $region21: #{tpu_custom_call.1} parent=11 // pred_check
          %p144 = pneg %p77
        $region22: #{tpu_custom_call.1} parent=11 // pred_check_branch
          %146 = sbr.rel (%p144) target = $region24
        $region23: #{tpu_custom_call.1} parent=11 // pred_region
          _
        $region24: #{tpu_custom_call.1} parent=11 // pred_fallthru
          _
      $region12: #{tpu_custom_call.1} parent=5 // pred_fallthru
        _
      %p147 = scmp.lt.s32.totalorder %s14, 2
      // Predicated region
      $region25: #{tpu_custom_call.1} parent=5 // pred_check
        %p148 = pneg %p147
      $region26: #{tpu_custom_call.1} parent=5 // pred_check_branch
        %150 = sbr.rel (%p148) target = $region28
      $region27: #{tpu_custom_call.1} parent=5 // pred_region
        _
      $region28: #{tpu_custom_call.1} parent=5 // pred_fallthru
        _
      %p151 = scmp.le.s32.totalorder 1, %s14
      %p152 = scmp.lt.s32.totalorder %s14, 3
      %p153 = pnand %p151, %p152
      %p154 = pneg %p153
      // Predicated region
      $region29: #{tpu_custom_call.1} parent=5 // pred_check
        _
      $region30: #{tpu_custom_call.1} parent=5 // pred_check_branch
        %156 = sbr.rel (%p153) target = $region32
      $region31: #{tpu_custom_call.1} parent=5 // pred_region
        %s157 = ssub.s32 %s14, 1
        // Predicated region
        $region33: #{tpu_custom_call.1} parent=31 // pred_check
          %p158 = pneg %p35
        $region34: #{tpu_custom_call.1} parent=31 // pred_check_branch
          %160 = sbr.rel (%p158) target = $region36
        $region35: #{tpu_custom_call.1} parent=31 // pred_region
          %162 = dma.done [#allocation3], 128
        $region36: #{tpu_custom_call.1} parent=31 // pred_fallthru
          _
        // Predicated region
        $region37: #{tpu_custom_call.1} parent=31 // pred_check
          %p163 = pneg %p56
        $region38: #{tpu_custom_call.1} parent=31 // pred_check_branch
          %165 = sbr.rel (%p163) target = $region40
        $region39: #{tpu_custom_call.1} parent=31 // pred_region
          %167 = dma.done [#allocation6], 512
        $region40: #{tpu_custom_call.1} parent=31 // pred_fallthru
          _
        %p168 = pneg %p35
        %p169 = pneg %p32
        %p170 = pneg %p56
        %p171 = pneg %p53
        %p172 = pneg %p77
        %p173 = pneg %p74
        %p174 = pneg %p103
        %p175 = pneg %p100
        %s176 = sand.u32 %s90, 1
        %s177 = scalar_lea.sflag [#allocation4], %s176
        %s178 = sand.u32 %s90, 1
        %s179 = smul.addr %s178, 16
        %s180 = scalar_lea.vmem [#allocation7], %s179
        %s181 = smul.u32 2, %s19
        %v182 = vld [vmem:[#allocation2] sm:$0xff]
        %v183 = vld [vmem:[#allocation5] sm:$0xff]
        %v184 = vld [vmem:[#allocation5 + $0x8] sm:$0xff]
        %v185 = vld [vmem:[#allocation5 + $0x10] sm:$0xff]
        %v186 = vld [vmem:[#allocation5 + $0x18] sm:$0xff]
        %v187 = vld [vmem:[%s2] sm:$0x1]
        %v189 = vperm.slane %v187, 0
        %vm191 = vcmask 261120
        %v193 = vsel %vm191, %v182, 0
        %195 = vmatpush.msra.mxu0 0.0
        %196 = vmatpush.msra.mxu0 0.0
        %197 = vmatpush.msra.mxu0 0.0
        %198 = vmatpush.msra.mxu0 0.0
        %199 = vmatpush.msra.mxu0 0.0
        %200 = vmatpush.msra.mxu0 0.0
        %201 = vmatpush.msra.mxu0 0.0
        %202 = vmatpush.msra.mxu0 0.0
        %203 = vmatpush.msra.mxu0 0.0
        %204 = vmatpush.msra.mxu0 0.0
        %205 = vmatpush.msra.mxu0 0.0
        %206 = vmatpush.msra.mxu0 0.0
        %207 = vmatpush.msra.mxu0 %v186
        %208 = vmatpush.msra.mxu0 %v185
        %209 = vmatpush.msra.mxu0 %v184
        %210 = vmatpush.msra.mxu0 %v183
        %211 = vmatmul.f32.gmra.mxu0 %v193
        %v212 = vpop.f32.mrf.mxu0
        %v213 = vadd.f32 %v189, %v212
        %214 = vdwg.mxu0
        %215 = vst [vmem:[%s180] sm:$0xff] %v213
        %216 = vst [vmem:[%s180 + $0x8] sm:$0xff] %v213
        %s217 = sand.u32 %s90, 1
        %s218 = scalar_lea.sflag [#allocation4], %s217
        %s219 = sand.u32 %s90, 1
        %s220 = smul.addr %s219, 16
        %s221 = scalar_lea.vmem [#allocation7], %s220
        // Predicated region
        $region41: #{tpu_custom_call.1} parent=31 // pred_check
          %p222 = pneg %p100
        $region42: #{tpu_custom_call.1} parent=31 // pred_check_branch
          %224 = sbr.rel (%p222) target = $region44
        $region43: #{tpu_custom_call.1} parent=31 // pred_region
          %s225 = smul.u32 2, %s19
          %227 = vsyncadd %s218, 0
          %s228 = smul.addr %s225, 8
          %s229 = scalar_lea.hbm %s3, %s228
          %s230 = sshll.u32 %s221, 4
          %s231 = int_to_ptr.vmem [resolvable:$true] %s230
          %s232 = sshll.u32 %s229, 4
          %s233 = int_to_ptr.hbm [resolvable:$true] %s232
          %238 = dma.vmem_to_hbm [thread:$0]  %s231, 256, %s233, %s218, 128, 128, 8
        $region44: #{tpu_custom_call.1} parent=31 // pred_fallthru
          _
      $region32: #{tpu_custom_call.1} parent=5 // pred_fallthru
        _
      %p239 = scmp.le.s32.totalorder 2, %s14
      // Predicated region
      $region45: #{tpu_custom_call.1} parent=5 // pred_check
        %p240 = pneg %p239
      $region46: #{tpu_custom_call.1} parent=5 // pred_check_branch
        %242 = sbr.rel (%p240) target = $region48
      $region47: #{tpu_custom_call.1} parent=5 // pred_region
        %s243 = ssub.s32 %s14, 2
        // Predicated region
        $region49: #{tpu_custom_call.1} parent=47 // pred_check
          %p244 = pneg %p106
        $region50: #{tpu_custom_call.1} parent=47 // pred_check_branch
          %246 = sbr.rel (%p244) target = $region52
        $region51: #{tpu_custom_call.1} parent=47 // pred_region
          %s247 = sand.u32 %s91, 1
          %s248 = scalar_lea.sflag [#allocation4], %s247
          %s249 = sand.u32 %s91, 1
          %s250 = smul.addr %s249, 16
          %s251 = scalar_lea.vmem [#allocation7], %s250
          %253 = dma.done %s248, 256
        $region52: #{tpu_custom_call.1} parent=47 // pred_fallthru
          _
      $region48: #{tpu_custom_call.1} parent=5 // pred_fallthru
        _
    $region6: #{tpu_custom_call.1} parent=1 // loop_footer
      %s18 = sadd.s32 1, %s14
    $region7: #{tpu_custom_call.1} parent=1 // loop_footer_branch
      %13 = sbr.rel target = $region3
    $region8: #{tpu_custom_call.1} parent=1 // loop_exit
      _
    %254 = vsyncpa [#allocation3], 1
    %s255 = scalar_lea.sflag [#allocation3], 1
    %256 = vsyncpa %s255, 1
    %257 = vsyncpa [#allocation6], 1
    %258 = vsyncpa [#allocation4], 1
    %s259 = scalar_lea.sflag [#allocation4], 1
    %260 = vsyncpa %s259, 1

</llo_original>
